<compile_context>
chip_gen: v7x
topology: tpu7x:2x2x1
jax: 0.10.0
libtpu: 0.0.40
codegen_flags: <defaults>
</compile_context>

<pallas_src>
import functools

import jax
import jax.numpy as jnp
from jax import lax
from jax.experimental import pallas as pl
from jax.experimental.pallas import tpu as pltpu

NEG_INF = -1e30
LEAKY_SLOPE = 0.2               # GATConv default negative_slope
DEFAULT_ROW_TILE = 128          # target-row tile; comfortable under v7x's 64 MiB VMEM
VMEM_LIMIT_BYTES = 48 * 1024 * 1024


def _elu(x):
    return jnp.where(x > 0, x, jnp.exp(jnp.minimum(x, 0.0)) - 1.0)


def _pad_to(n, m):
    return ((n + m - 1) // m) * m


def _head_block_rows(a, heads, hidden):
    """[heads, hidden] -> [heads, heads*hidden]; row h holds a[h] in head h's lane slice."""
    rows = jnp.zeros((heads, heads * hidden), dtype=a.dtype)
    for h in range(heads):
        rows = rows.at[h, h * hidden:(h + 1) * hidden].set(a[h])
    return rows


def _use_bf16_exp():
    """bf16 EUP path exists on v6e/v7x; keep softmax exp in f32 on older chips."""
    try:
        kind = jax.devices()[0].device_kind.lower()
    except Exception:
        return False
    return ("v6" in kind) or ("v7" in kind)


# --------------------------- projection kernel (per layer) ---------------------------
def gat_project_kernel(x_ref, w_ref, asrc_ref, adst_ref, xp_ref, ad_ref, asr_ref):
    """Tile-invariant per-layer precompute for one row tile of nodes.

    x_ref    : [T, Fin]
    w_ref    : [Fin, H*C]
    asrc_ref : [H, H*C]   block-structured a_src rows
    adst_ref : [H, H*C]   block-structured a_dst rows
    xp_ref   : [T, H*C]   bf16 projected features (out)
    ad_ref   : [T, H]     a_dst . (W x_t) per target (out)
    asr_ref  : [H, T]     a_src . (W x_s) per source (out)
    """
    xp = jnp.dot(x_ref[...].astype(jnp.bfloat16), w_ref[...].astype(jnp.bfloat16),
                 preferred_element_type=jnp.float32)
    ad_ref[...] = lax.dot_general(xp, adst_ref[...], (((1,), (1,)), ((), ())),
                                  preferred_element_type=jnp.float32)
    asr_ref[...] = lax.dot_general(asrc_ref[...], xp, (((1,), (1,)), ((), ())),
                                   preferred_element_type=jnp.float32)
    xp_ref[...] = xp.astype(jnp.bfloat16)


# ----------------------------- masked attention helper -------------------------------
def _masked_attention(ad, asr, bias, xp_bf, heads, hidden, exp_bf16):
    """Per-head masked softmax + attn @ V; returns [T, heads*hidden] f32 (pre-bias)."""
    outs = []
    for h in range(heads):
        raw = ad[:, h:h + 1] + asr[h:h + 1, :]                     # [T, N]
        raw = jnp.where(raw > 0, raw, LEAKY_SLOPE * raw)           # LeakyReLU
        s = raw + bias                                             # mask non-edges
        m = jnp.max(s, axis=-1, keepdims=True)
        z = s - m
        if exp_bf16:
            e = jnp.exp(z.astype(jnp.bfloat16)).astype(jnp.float32)
        else:
            e = jnp.exp(z)
        denom = jnp.sum(e, axis=-1, keepdims=True)
        attn = e * pl.reciprocal(denom, approx=True)               # softmax over sources
        outs.append(jnp.dot(attn.astype(jnp.bfloat16),
                            xp_bf[:, h * hidden:(h + 1) * hidden],
                            preferred_element_type=jnp.float32))   # [T, C]
    return jnp.concatenate(outs, axis=-1) if heads > 1 else outs[0]


# ------------------------- attention kernel (node outputs) ---------------------------
def gat_attn_kernel(xp_ref, ad_ref, asr_ref, adj_ref, b_ref, out_ref, *,
                    heads, hidden, exp_bf16):
    # int8 adjacency tile -> additive (0 / -1e30) bias, built once per tile.
    bias = (1.0 - adj_ref[...].astype(jnp.float32)) * NEG_INF      # [T, N]
    h = _masked_attention(ad_ref[...], asr_ref[...], bias, xp_ref[...],
                          heads, hidden, exp_bf16)
    out_ref[...] = _elu(h + b_ref[...])                            # one dense [T, H*C] store


# ---------------- attention kernel fused with global_mean_pool (layer 2) -------------
def gat_attn_pool_kernel(xp_ref, ad_ref, asr_ref, adj_ref, b_ref, pool_ref, out_ref, *,
                         heads, hidden, exp_bf16):
    bias = (1.0 - adj_ref[...].astype(jnp.float32)) * NEG_INF      # [T, N]
    h = _masked_attention(ad_ref[...], asr_ref[...], bias, xp_ref[...],
                          heads, hidden, exp_bf16)
    h = _elu(h + b_ref[...])                                       # [T, C]
    partial = jnp.dot(pool_ref[...], h, preferred_element_type=jnp.float32)  # [B, C]
    out_ref[...] = partial.reshape((1,) + partial.shape)


# --------------------------- partial-reduce + MLP head kernel ------------------------
def pool_mlp_kernel(part_ref, wl1_ref, bl1_ref, wl2_ref, bl2_ref, out_ref):
    pooled = jnp.sum(part_ref[...], axis=0)                        # [B, C]
    z = jnp.dot(pooled, wl1_ref[...], preferred_element_type=jnp.float32) + bl1_ref[...]
    z = jnp.maximum(z, 0.0)                                        # ReLU
    out_ref[...] = jnp.dot(z, wl2_ref[...], preferred_element_type=jnp.float32) + bl2_ref[...]


# ------------------------------------ wrappers ---------------------------------------
def _gat_project_call(x, w, asrc_rows, adst_rows, *, heads, hidden, row_tile):
    n_pad, fin = x.shape
    hc = heads * hidden
    num_tiles = n_pad // row_tile
    flops = int(2 * n_pad * fin * hc + 4 * n_pad * hc * heads)
    bytes_accessed = int(4 * n_pad * fin + 4 * fin * hc + 2 * n_pad * hc + 8 * n_pad * heads)
    return pl.pallas_call(
        gat_project_kernel,
        out_shape=(jax.ShapeDtypeStruct((n_pad, hc), jnp.bfloat16),
                   jax.ShapeDtypeStruct((n_pad, heads), jnp.float32),
                   jax.ShapeDtypeStruct((heads, n_pad), jnp.float32)),
        grid=(num_tiles,),
        in_specs=[
            pl.BlockSpec((row_tile, fin), lambda i: (i, 0)),       # x tile
            pl.BlockSpec((fin, hc), lambda i: (0, 0)),             # W
            pl.BlockSpec((heads, hc), lambda i: (0, 0)),           # a_src block rows
            pl.BlockSpec((heads, hc), lambda i: (0, 0)),           # a_dst block rows
        ],
        out_specs=(
            pl.BlockSpec((row_tile, hc), lambda i: (i, 0)),        # xp (bf16)
            pl.BlockSpec((row_tile, heads), lambda i: (i, 0)),     # ad
            pl.BlockSpec((heads, row_tile), lambda i: (0, i)),     # asr
        ),
        compiler_params=pltpu.CompilerParams(
            dimension_semantics=("parallel",),
            vmem_limit_bytes=VMEM_LIMIT_BYTES),
        cost_estimate=pl.CostEstimate(flops=flops, transcendentals=0,
                                      bytes_accessed=bytes_accessed),
    )(x, w, asrc_rows, adst_rows)


def _gat_attn_call(xp_bf, ad, asr, adj_i8, b, *, heads, hidden, row_tile, exp_bf16):
    n_pad, hc = xp_bf.shape
    num_tiles = n_pad // row_tile
    kernel = functools.partial(gat_attn_kernel, heads=heads, hidden=hidden,
                               exp_bf16=exp_bf16)
    flops = int(2 * heads * n_pad * n_pad * hidden + 8 * heads * n_pad * n_pad)
    bytes_accessed = int(n_pad * n_pad + 2 * n_pad * hc + 4 * n_pad * hc + 8 * n_pad * heads)
    return pl.pallas_call(
        kernel,
        out_shape=jax.ShapeDtypeStruct((n_pad, hc), jnp.float32),
        grid=(num_tiles,),
        in_specs=[
            pl.BlockSpec((n_pad, hc), lambda i: (0, 0)),           # xp (all sources, bf16, resident)
            pl.BlockSpec((row_tile, heads), lambda i: (i, 0)),     # a_dst logits (targets)
            pl.BlockSpec((heads, n_pad), lambda i: (0, 0)),        # a_src logits (sources)
            pl.BlockSpec((row_tile, n_pad), lambda i: (i, 0)),     # adjacency tile (int8)
            pl.BlockSpec((1, hc), lambda i: (0, 0)),               # GATConv bias
        ],
        out_specs=pl.BlockSpec((row_tile, hc), lambda i: (i, 0)),
        compiler_params=pltpu.CompilerParams(
            dimension_semantics=("parallel",),
            vmem_limit_bytes=VMEM_LIMIT_BYTES),
        cost_estimate=pl.CostEstimate(flops=flops,
                                      transcendentals=int(heads * n_pad * n_pad),
                                      bytes_accessed=bytes_accessed),
    )(xp_bf, ad, asr, adj_i8, b)


def _gat_attn_pool_call(xp_bf, ad, asr, adj_i8, b, pool, *, heads, hidden, row_tile, exp_bf16):
    n_pad, hc = xp_bf.shape
    n_graphs = pool.shape[0]
    num_tiles = n_pad // row_tile
    kernel = functools.partial(gat_attn_pool_kernel, heads=heads, hidden=hidden,
                               exp_bf16=exp_bf16)
    flops = int(2 * heads * n_pad * n_pad * hidden + 8 * heads * n_pad * n_pad
                + 2 * n_graphs * n_pad * hc)
    bytes_accessed = int(n_pad * n_pad + 2 * n_pad * hc + 4 * n_graphs * n_pad
                         + 4 * num_tiles * n_graphs * hc)
    return pl.pallas_call(
        kernel,
        out_shape=jax.ShapeDtypeStruct((num_tiles, n_graphs, hc), jnp.float32),
        grid=(num_tiles,),
        in_specs=[
            pl.BlockSpec((n_pad, hc), lambda i: (0, 0)),           # xp (all sources, bf16)
            pl.BlockSpec((row_tile, heads), lambda i: (i, 0)),     # a_dst logits
            pl.BlockSpec((heads, n_pad), lambda i: (0, 0)),        # a_src logits
            pl.BlockSpec((row_tile, n_pad), lambda i: (i, 0)),     # adjacency tile (int8)
            pl.BlockSpec((1, hc), lambda i: (0, 0)),               # GATConv bias
            pl.BlockSpec((n_graphs, row_tile), lambda i: (0, i)),  # pool columns for this tile
        ],
        out_specs=pl.BlockSpec((1, n_graphs, hc), lambda i: (i, 0, 0)),
        compiler_params=pltpu.CompilerParams(
            dimension_semantics=("parallel",),
            vmem_limit_bytes=VMEM_LIMIT_BYTES),
        cost_estimate=pl.CostEstimate(flops=flops,
                                      transcendentals=int(heads * n_pad * n_pad),
                                      bytes_accessed=bytes_accessed),
    )(xp_bf, ad, asr, adj_i8, b, pool)


def gat_regressor_forward(x, adj, pool, params, *, heads, hidden,
                          row_tile=DEFAULT_ROW_TILE, exp_bf16=None):
    (w1, asrc1, adst1, b1, w2, asrc2, adst2, b2, wl1, bl1, wl2, bl2) = params
    if exp_bf16 is None:
        exp_bf16 = _use_bf16_exp()
    n = x.shape[0]
    n_graphs = pool.shape[0]

    # Pad node count (padded nodes are non-edges in adj -> masked out as sources,
    # and get zero pool weight -> inert everywhere downstream).
    rt = min(row_tile, _pad_to(n, 8))
    n_pad = _pad_to(n, rt)
    if n_pad != n:
        x = jnp.pad(x, ((0, n_pad - n), (0, 0)))
        adj = jnp.pad(adj, ((0, n_pad - n), (0, n_pad - n)))
        pool = jnp.pad(pool, ((0, 0), (0, n_pad - n)))

    adj_i8 = adj.astype(jnp.int8)   # stream the N^2 mask as int8 (4x fewer HBM bytes)

    # Block-structured attention vectors: one lane-dense contraction per layer.
    asrc1_rows = _head_block_rows(asrc1, heads, hidden)
    adst1_rows = _head_block_rows(adst1, heads, hidden)
    asrc2_rows = _head_block_rows(asrc2, 1, hidden)
    adst2_rows = _head_block_rows(adst2, 1, hidden)

    # Layer 1: hoisted projection (once per node) + row-tiled masked attention.
    xp1, ad1, asr1 = _gat_project_call(x, w1, asrc1_rows, adst1_rows,
                                       heads=heads, hidden=hidden, row_tile=rt)
    h1 = _gat_attn_call(xp1, ad1, asr1, adj_i8, b1,
                        heads=heads, hidden=hidden, row_tile=rt, exp_bf16=exp_bf16)

    # Layer 2 (heads=1) fused with global_mean_pool: per-tile partial pooled sums.
    xp2, ad2, asr2 = _gat_project_call(h1, w2, asrc2_rows, adst2_rows,
                                       heads=1, hidden=hidden, row_tile=rt)
    partials = _gat_attn_pool_call(xp2, ad2, asr2, adj_i8, b2, pool,
                                   heads=1, hidden=hidden, row_tile=rt,
                                   exp_bf16=exp_bf16)               # [tiles, B, C]

    # Reduce partials + MLP head (tiny; everything in VMEM).
    vmem = pl.BlockSpec(memory_space=pltpu.MemorySpace.VMEM)
    out = pl.pallas_call(
        pool_mlp_kernel,
        out_shape=jax.ShapeDtypeStruct((n_graphs, 1), jnp.float32),
        in_specs=[vmem] * 5,
        out_specs=vmem,
    )(partials, wl1, bl1, wl2, bl2)
    return out.reshape(-1)   # equivalent of x.view(-1)


# ------------- pure-JAX reference (same dense math; exact softmax divide) -------------
def reference_forward(x, adj, pool, params, *, heads, hidden, exp_bf16):
    (w1, asrc1, adst1, b1, w2, asrc2, adst2, b2, wl1, bl1, wl2, bl2) = params
    mask = (1.0 - adj) * NEG_INF

    def gat_layer(xin, w, asrc, adst, b, nheads):
        xp = jnp.dot(xin.astype(jnp.bfloat16), w.astype(jnp.bfloat16),
                     preferred_element_type=jnp.float32)
        xp_bf = xp.astype(jnp.bfloat16)
        outs = []
        for h in range(nheads):
            xph = xp[:, h * hidden:(h + 1) * hidden]
            ad = xph @ adst[h:h + 1].T                 # [N, 1]
            asr = asrc[h:h + 1] @ xph.T                # [1, N]
            raw = ad + asr
            raw = jnp.where(raw > 0, raw, LEAKY_SLOPE * raw)
            s = raw + mask
            z = s - jnp.max(s, axis=-1, keepdims=True)
            if exp_bf16:
                e = jnp.exp(z.astype(jnp.bfloat16)).astype(jnp.float32)
            else:
                e = jnp.exp(z)
            a = e / jnp.sum(e, axis=-1, keepdims=True)
            outs.append(jnp.dot(a.astype(jnp.bfloat16),
                                xp_bf[:, h * hidden:(h + 1) * hidden],
                                preferred_element_type=jnp.float32))
        return _elu(jnp.concatenate(outs, axis=-1) + b)

    h1 = gat_layer(x, w1, asrc1, adst1, b1, heads)
    h2 = gat_layer(h1, w2, asrc2, adst2, b2, 1)
    pooled = pool @ h2
    z = jnp.maximum(pooled @ wl1 + bl1, 0.0)
    return (z @ wl2 + bl2).reshape(-1)


if __name__ == "__main__":
    # Sizes implied by the module: in_channels=8, hidden_channels=32, heads=4
    IN_CH, HID, HEADS = 8, 32, 4
    N_PER_GRAPH, N_GRAPHS = 8, 2
    N = N_PER_GRAPH * N_GRAPHS

    key = jax.random.PRNGKey(0)
    keys = jax.random.split(key, 16)

    # Node features
    x = jax.random.normal(keys[0], (N, IN_CH), dtype=jnp.float32)

    # Graph: two disjoint bidirectional rings of 8 nodes; batch = graph id
    src, dst = [], []
    for g in range(N_GRAPHS):
        off = g * N_PER_GRAPH
        for i in range(N_PER_GRAPH):
            a, b = off + i, off + (i + 1) % N_PER_GRAPH
            src += [a, b]
            dst += [b, a]
    edge_index = jnp.array([src, dst], dtype=jnp.int32)        # [2, E]
    batch = jnp.array(sum([[g] * N_PER_GRAPH for g in range(N_GRAPHS)], []),
                      dtype=jnp.int32)

    # Dense adjacency adj[t, s] (messages flow s -> t) + self loops (GATConv default)
    adj = jnp.zeros((N, N), dtype=jnp.float32)
    adj = adj.at[edge_index[1], edge_index[0]].set(1.0)
    adj = adj.at[jnp.arange(N), jnp.arange(N)].set(1.0)

    # global_mean_pool as a [B, N] matrix
    onehot = (batch[None, :] == jnp.arange(N_GRAPHS)[:, None]).astype(jnp.float32)
    pool = onehot / jnp.sum(onehot, axis=1, keepdims=True)

    # Deterministic parameters (shapes from the module __init__)
    s = 0.1
    w1 = s * jax.random.normal(keys[1], (IN_CH, HEADS * HID), dtype=jnp.float32)
    asrc1 = s * jax.random.normal(keys[2], (HEADS, HID), dtype=jnp.float32)
    adst1 = s * jax.random.normal(keys[3], (HEADS, HID), dtype=jnp.float32)
    b1 = s * jax.random.normal(keys[4], (1, HEADS * HID), dtype=jnp.float32)
    w2 = s * jax.random.normal(keys[5], (HEADS * HID, HID), dtype=jnp.float32)
    asrc2 = s * jax.random.normal(keys[6], (1, HID), dtype=jnp.float32)
    adst2 = s * jax.random.normal(keys[7], (1, HID), dtype=jnp.float32)
    b2 = s * jax.random.normal(keys[8], (1, HID), dtype=jnp.float32)
    wl1 = s * jax.random.normal(keys[9], (HID, HID // 2), dtype=jnp.float32)
    bl1 = s * jax.random.normal(keys[10], (1, HID // 2), dtype=jnp.float32)
    wl2 = s * jax.random.normal(keys[11], (HID // 2, 1), dtype=jnp.float32)
    bl2 = s * jax.random.normal(keys[12], (1, 1), dtype=jnp.float32)

    params = (w1, asrc1, adst1, b1, w2, asrc2, adst2, b2, wl1, bl1, wl2, bl2)

    exp_bf16 = _use_bf16_exp()
    out = gat_regressor_forward(x, adj, pool, params, heads=HEADS, hidden=HID,
                                exp_bf16=exp_bf16)
    out = jax.block_until_ready(out)

    ref = reference_forward(x, adj, pool, params, heads=HEADS, hidden=HID,
                            exp_bf16=exp_bf16)
    assert out.shape == (N_GRAPHS,)
    # Loose-ish tolerance: kernel uses the approximate EUP reciprocal in the softmax
    # normalize (reference uses an exact divide); everything else mirrors the kernel.
    assert jnp.allclose(out, ref, rtol=1e-2, atol=1e-2), (out, ref)

    print("KERNEL_OK")
</pallas_src>

<mosaic_0001>
module attributes {stable_mosaic.version = 11 : i64} {
  func.func @gat_project_kernel(%arg0: i32, %arg1: memref<16x8xf32, #tpu.memory_space<vmem>>, %arg2: memref<8x128xf32, #tpu.memory_space<vmem>>, %arg3: memref<4x128xf32, #tpu.memory_space<vmem>>, %arg4: memref<4x128xf32, #tpu.memory_space<vmem>>, %arg5: memref<16x128xbf16, #tpu.memory_space<vmem>>, %arg6: memref<16x4xf32, #tpu.memory_space<vmem>>, %arg7: memref<4x16xf32, #tpu.memory_space<vmem>>) attributes {dimension_semantics = [#tpu.dimension_semantics<parallel>], iteration_bounds = array<i64: 1>, scalar_prefetch = 0 : i64, scratch_operands = 0 : i64, tpu.core_type = #tpu.core_type<tc>, window_params = [{transform_indices = @transform_0, window_bounds = array<i64: 16, 8>}, {pipeline_mode = #tpu.pipeline_mode<synchronous>, transform_indices = @transform_1, window_bounds = array<i64: 8, 128>}, {pipeline_mode = #tpu.pipeline_mode<synchronous>, transform_indices = @transform_2, window_bounds = array<i64: 4, 128>}, {pipeline_mode = #tpu.pipeline_mode<synchronous>, transform_indices = @transform_3, window_bounds = array<i64: 4, 128>}, {transform_indices = @transform_4, window_bounds = array<i64: 16, 128>}, {transform_indices = @transform_5, window_bounds = array<i64: 16, 4>}, {transform_indices = @transform_6, window_bounds = array<i64: 4, 16>}]} {
    %c0 = arith.constant 0 : index
    %c0_0 = arith.constant 0 : index
    %0 = vector.load %arg1[%c0, %c0_0] : memref<16x8xf32, #tpu.memory_space<vmem>>, vector<16x8xf32>
    %1 = arith.truncf %0 : vector<16x8xf32> to vector<16x8xbf16>
    %c0_1 = arith.constant 0 : index
    %c0_2 = arith.constant 0 : index
    %2 = vector.load %arg2[%c0_1, %c0_2] : memref<8x128xf32, #tpu.memory_space<vmem>>, vector<8x128xf32>
    %3 = arith.truncf %2 : vector<8x128xf32> to vector<8x128xbf16>
    %cst = arith.constant dense<0.000000e+00> : vector<16x128xf32>
    %4 = tpu.matmul %1, %3, %cst {dimension_numbers = #tpu.dot_dimension_numbers<[1], [0], [0], [1], [0, 0, 1, 1], [], []>} : vector<16x8xbf16>, vector<8x128xbf16>, vector<16x128xf32> -> vector<16x128xf32>
    %c0_3 = arith.constant 0 : index
    %c0_4 = arith.constant 0 : index
    %5 = vector.load %arg4[%c0_3, %c0_4] : memref<4x128xf32, #tpu.memory_space<vmem>>, vector<4x128xf32>
    %cst_5 = arith.constant dense<0.000000e+00> : vector<16x4xf32>
    %6 = tpu.matmul %4, %5, %cst_5 {dimension_numbers = #tpu.dot_dimension_numbers<[1], [1], [0], [0], [0, 0, 1, 0], [], []>} : vector<16x128xf32>, vector<4x128xf32>, vector<16x4xf32> -> vector<16x4xf32>
    %c0_6 = arith.constant 0 : index
    %c0_7 = arith.constant 0 : index
    %7 = vector.load %arg6[%c0_6, %c0_7] : memref<16x4xf32, #tpu.memory_space<vmem>>, vector<16x4xf32>
    tpu.vector_store %arg6[%c0_6, %c0_7], %6 {strides = array<i32>} : memref<16x4xf32, #tpu.memory_space<vmem>>, vector<16x4xf32>,
    %c0_8 = arith.constant 0 : index
    %c0_9 = arith.constant 0 : index
    %8 = vector.load %arg3[%c0_8, %c0_9] : memref<4x128xf32, #tpu.memory_space<vmem>>, vector<4x128xf32>
    %cst_10 = arith.constant dense<0.000000e+00> : vector<4x16xf32>
    %9 = tpu.matmul %8, %4, %cst_10 {dimension_numbers = #tpu.dot_dimension_numbers<[1], [1], [0], [0], [0, 0, 1, 0], [], []>} : vector<4x128xf32>, vector<16x128xf32>, vector<4x16xf32> -> vector<4x16xf32>
    %c0_11 = arith.constant 0 : index
    %c0_12 = arith.constant 0 : index
    %10 = vector.load %arg7[%c0_11, %c0_12] : memref<4x16xf32, #tpu.memory_space<vmem>>, vector<4x16xf32>
    tpu.vector_store %arg7[%c0_11, %c0_12], %9 {strides = array<i32>} : memref<4x16xf32, #tpu.memory_space<vmem>>, vector<4x16xf32>,
    %11 = arith.truncf %4 : vector<16x128xf32> to vector<16x128xbf16>
    %c0_13 = arith.constant 0 : index
    %c0_14 = arith.constant 0 : index
    %12 = vector.load %arg5[%c0_13, %c0_14] : memref<16x128xbf16, #tpu.memory_space<vmem>>, vector<16x128xbf16>
    tpu.vector_store %arg5[%c0_13, %c0_14], %11 {strides = array<i32>} : memref<16x128xbf16, #tpu.memory_space<vmem>>, vector<16x128xbf16>,
    return
  }
  func.func @transform_0(%arg0: i32) -> (i32, i32) {
    %c0_i32 = arith.constant 0 : i32
    %c0_i32_0 = arith.constant 0 : i32
    return %arg0, %c0_i32 : i32, i32
  }
  func.func @transform_1(%arg0: i32) -> (i32, i32) {
    %c0_i32 = arith.constant 0 : i32
    %c0_i32_0 = arith.constant 0 : i32
    %c0_i32_1 = arith.constant 0 : i32
    return %c0_i32, %c0_i32_0 : i32, i32
  }
  func.func @transform_2(%arg0: i32) -> (i32, i32) {
    %c0_i32 = arith.constant 0 : i32
    %c0_i32_0 = arith.constant 0 : i32
    %c0_i32_1 = arith.constant 0 : i32
    return %c0_i32, %c0_i32_0 : i32, i32
  }
  func.func @transform_3(%arg0: i32) -> (i32, i32) {
    %c0_i32 = arith.constant 0 : i32
    %c0_i32_0 = arith.constant 0 : i32
    %c0_i32_1 = arith.constant 0 : i32
    return %c0_i32, %c0_i32_0 : i32, i32
  }
  func.func @transform_4(%arg0: i32) -> (i32, i32) {
    %c0_i32 = arith.constant 0 : i32
    %c0_i32_0 = arith.constant 0 : i32
    return %arg0, %c0_i32 : i32, i32
  }
  func.func @transform_5(%arg0: i32) -> (i32, i32) {
    %c0_i32 = arith.constant 0 : i32
    %c0_i32_0 = arith.constant 0 : i32
    return %arg0, %c0_i32 : i32, i32
  }
  func.func @transform_6(%arg0: i32) -> (i32, i32) {
    %c0_i32 = arith.constant 0 : i32
    %c0_i32_0 = arith.constant 0 : i32
    return %c0_i32, %arg0 : i32, i32
  }
}

</mosaic_0001>

<llo_original>
// kernel: tpu_custom_call.1
$region0: #{tpu_custom_call.1}
  #allocation0 [shape = 'u32[]', space=smem, size = 0x4, offset = 0x4, fixed_abs, tag = 'smem constant byte address 0x4 - core index']
  #allocation1 [shape = 'u32[144,128]{1,0:T(1,128)}', space=vmem, size = 0x12000, scoped, tag = 'internal scratch']
  %s0 = inlined_call_operand.vmem [shape: f32[16,8], index: 0, kind: input, shape index: {}]
  %s1 = inlined_call_operand.vmem [shape: f32[8,128], index: 1, kind: input, shape index: {}]
  %s2 = inlined_call_operand.vmem [shape: f32[4,128], index: 2, kind: input, shape index: {}]
  %s3 = inlined_call_operand.vmem [shape: f32[4,128], index: 3, kind: input, shape index: {}]
  %s4 = inlined_call_operand.hbm [shape: bf16[16,128], index: 4, kind: output, shape index: {0}]
  %s5 = inlined_call_operand.vmem [shape: f32[16,4], index: 5, kind: output, shape index: {1}]
  %s6 = inlined_call_operand.hbm [shape: f32[4,16], index: 6, kind: output, shape index: {2}]
  %7 = xla_tuple %s4, %s5, %s6
  %s8 = sld [smem:[#allocation0]]
  $region42: #{tpu_custom_call.1} parent=0
    _
  %s10 = ssub.s32 1, %s8
  %s11 = scalar_select 0, %s10, %s8
  $region1: #{tpu_custom_call.1} parent=0
    #allocation2 [shape = 'u8[4096]{0}', space=vmem, size = 0x1000, scoped, tag = 'output window, operand 0, single buffered']
    #allocation3 [shape = 's32[1]{0}', space=sflag, size = 0x4, scoped, tag = 'scoped memory for tpu_custom_call.1']
    #allocation4 [shape = 'u8[2048]{0}', space=vmem, size = 0x800, scoped, tag = 'output window, operand 2, single buffered']
    #allocation5 [shape = 's32[1]{0}', space=sflag, size = 0x4, scoped, tag = 'scoped memory for tpu_custom_call.1']
    %12 = vsyncpa [#allocation3], 0
    %13 = vsyncpa [#allocation5], 0
    // Predicated region
    $region2: #{tpu_custom_call.1} parent=1 // pred_check
      _
    $region3: #{tpu_custom_call.1} parent=1 // pred_check_branch
      %15 = sbr.rel (0) target = $region5
    $region4: #{tpu_custom_call.1} parent=1 // pred_region
      _
    $region5: #{tpu_custom_call.1} parent=1 // pred_fallthru
      _
    // Predicated region
    $region6: #{tpu_custom_call.1} parent=1 // pred_check
      _
    $region7: #{tpu_custom_call.1} parent=1 // pred_check_branch
      %17 = sbr.rel (0) target = $region9
    $region8: #{tpu_custom_call.1} parent=1 // pred_region
      _
    $region9: #{tpu_custom_call.1} parent=1 // pred_fallthru
      _
    // Predicated region
    $region10: #{tpu_custom_call.1} parent=1 // pred_check
      _
    $region11: #{tpu_custom_call.1} parent=1 // pred_check_branch
      %19 = sbr.rel (0) target = $region13
    $region12: #{tpu_custom_call.1} parent=1 // pred_region
      _
    $region13: #{tpu_custom_call.1} parent=1 // pred_fallthru
      _
    // Predicated region
    $region14: #{tpu_custom_call.1} parent=1 // pred_check
      _
    $region15: #{tpu_custom_call.1} parent=1 // pred_check_branch
      %21 = sbr.rel (0) target = $region17
    $region16: #{tpu_custom_call.1} parent=1 // pred_region
      _
    $region17: #{tpu_custom_call.1} parent=1 // pred_fallthru
      _
    %v23 = vld [vmem:[%s0] sm:$0xff]
    %v24 = vld [vmem:[%s0 + $0x8] sm:$0xff]
    %v25 = vpack.c.bf16 %v24, %v23
    %v26 = vld [vmem:[%s1] sm:$0xff]
    %v27 = vpack.c.bf16 %v26, %v26
    %vm28 = vcmask 64512
    %v30 = vsel %vm28, %v25, 0
    %vm32 = vcmask 1043456
    %v34 = vsel %vm32, %v27, 0
    %36 = vmatprep.subr.bf16.mxu0 0
    %37 = vmatpush1.bf16.msra.mxu0 %v34
    %38 = vmatprep.subr.bf16.mxu0 0
    %39 = vmatpush1.bf16.msra.mxu0 0
    %40 = vmatprep.subr.bf16.mxu0 0
    %41 = vmatpush1.bf16.msra.mxu0 0
    %42 = vmatprep.subr.bf16.mxu0 0
    %43 = vmatpush1.bf16.msra.mxu0 0
    %44 = vmatprep.subr.bf16.mxu0 0
    %45 = vmatpush1.bf16.msra.mxu0 0
    %46 = vmatprep.subr.bf16.mxu0 0
    %47 = vmatpush1.bf16.msra.mxu0 0
    %48 = vmatprep.subr.bf16.mxu0 0
    %49 = vmatpush1.bf16.msra.mxu0 0
    %50 = vmatprep.subr.bf16.mxu0 0
    %51 = vmatpush1.bf16.msra.mxu0 0
    %52 = vmatprep.subr.bf16.mxu0 0
    %53 = vmatpush1.bf16.msra.mxu0 0
    %54 = vmatprep.subr.bf16.mxu0 0
    %55 = vmatpush1.bf16.msra.mxu0 0
    %56 = vmatprep.subr.bf16.mxu0 0
    %57 = vmatpush1.bf16.msra.mxu0 0
    %58 = vmatprep.subr.bf16.mxu0 0
    %59 = vmatpush1.bf16.msra.mxu0 0
    %60 = vmatprep.subr.bf16.mxu0 0
    %61 = vmatpush1.bf16.msra.mxu0 0
    %62 = vmatprep.subr.bf16.mxu0 0
    %63 = vmatpush1.bf16.msra.mxu0 0
    %64 = vmatprep.subr.bf16.mxu0 0
    %65 = vmatpush1.bf16.msra.mxu0 0
    %66 = vmatprep.subr.bf16.mxu0 0
    %67 = vmatpush1.bf16.msra.mxu0 0
    %68 = vmatprep.mubr.bf16.mxu0 0
    %69 = vmatmul.mubr.bf16.gmra.mrb[0].mxu0 %v30
    %v70 = vpop.f32.mrb[0].mxu0
    %v71 = vadd.f32 0.0, %v70
    %v72 = vpop.f32.mrb[0].mxu0
    %v73 = vpop.f32.mrb[0].mxu0
    %v74 = vadd.f32 0.0, %v73
    %v75 = vpop.f32.mrb[0].mxu0
    %76 = vdwg.mxu0
    %v77 = vld [vmem:[%s3] sm:$0xf]
    %78 = vmatprep.subr.mxu0 0.0
    %79 = vmatpush1.xpose.msra.mxu0 %v77
    %80 = vmatprep.subr.mxu0 0.0
    %81 = vmatpush1.xpose.msra.mxu0 0.0
    %82 = vmatprep.subr.mxu0 0.0
    %83 = vmatpush1.xpose.msra.mxu0 0.0
    %84 = vmatprep.subr.mxu0 0.0
    %85 = vmatpush1.xpose.msra.mxu0 0.0
    %86 = vmatprep.subr.mxu0 0.0
    %87 = vmatpush1.xpose.msra.mxu0 0.0
    %88 = vmatprep.subr.mxu0 0.0
    %89 = vmatpush1.xpose.msra.mxu0 0.0
    %90 = vmatprep.subr.mxu0 0.0
    %91 = vmatpush1.xpose.msra.mxu0 0.0
    %92 = vmatprep.subr.mxu0 0.0
    %93 = vmatpush1.xpose.msra.mxu0 0.0
    %94 = vmatprep.subr.mxu0 0.0
    %95 = vmatpush1.xpose.msra.mxu0 0.0
    %96 = vmatprep.subr.mxu0 0.0
    %97 = vmatpush1.xpose.msra.mxu0 0.0
    %98 = vmatprep.subr.mxu0 0.0
    %99 = vmatpush1.xpose.msra.mxu0 0.0
    %100 = vmatprep.subr.mxu0 0.0
    %101 = vmatpush1.xpose.msra.mxu0 0.0
    %102 = vmatprep.subr.mxu0 0.0
    %103 = vmatpush1.xpose.msra.mxu0 0.0
    %104 = vmatprep.subr.mxu0 0.0
    %105 = vmatpush1.xpose.msra.mxu0 0.0
    %106 = vmatprep.subr.mxu0 0.0
    %107 = vmatpush1.xpose.msra.mxu0 0.0
    %108 = vmatprep.subr.mxu0 0.0
    %109 = vmatpush1.xpose.msra.mxu0 0.0
    %110 = vmatprep.subr.mxu0 0.0
    %111 = vmatpush1.xpose.msra.mxu0 0.0
    %112 = vmatprep.subr.mxu0 0.0
    %113 = vmatpush1.xpose.msra.mxu0 0.0
    %114 = vmatprep.subr.mxu0 0.0
    %115 = vmatpush1.xpose.msra.mxu0 0.0
    %116 = vmatprep.subr.mxu0 0.0
    %117 = vmatpush1.xpose.msra.mxu0 0.0
    %118 = vmatprep.subr.mxu0 0.0
    %119 = vmatpush1.xpose.msra.mxu0 0.0
    %120 = vmatprep.subr.mxu0 0.0
    %121 = vmatpush1.xpose.msra.mxu0 0.0
    %122 = vmatprep.subr.mxu0 0.0
    %123 = vmatpush1.xpose.msra.mxu0 0.0
    %124 = vmatprep.subr.mxu0 0.0
    %125 = vmatpush1.xpose.msra.mxu0 0.0
    %126 = vmatprep.subr.mxu0 0.0
    %127 = vmatpush1.xpose.msra.mxu0 0.0
    %128 = vmatprep.subr.mxu0 0.0
    %129 = vmatpush1.xpose.msra.mxu0 0.0
    %130 = vmatprep.subr.mxu0 0.0
    %131 = vmatpush1.xpose.msra.mxu0 0.0
    %132 = vmatprep.subr.mxu0 0.0
    %133 = vmatpush1.xpose.msra.mxu0 0.0
    %134 = vmatprep.subr.mxu0 0.0
    %135 = vmatpush1.xpose.msra.mxu0 0.0
    %136 = vmatprep.subr.mxu0 0.0
    %137 = vmatpush1.xpose.msra.mxu0 0.0
    %138 = vmatprep.subr.mxu0 0.0
    %139 = vmatpush1.xpose.msra.mxu0 0.0
    %140 = vmatprep.subr.mxu0 0.0
    %141 = vmatpush1.xpose.msra.mxu0 0.0
    %142 = vmatprep.mubr.f32.mxu0 0.0
    %143 = vmatmul.mubr.f32.gmra.mrb[0].mxu0 %v71
    %v144 = vpop.f32.mrb[0].mxu0
    %v145 = vadd.f32 0.0, %v144
    %v146 = vpop.f32.mrb[0].mxu0
    %147 = vmatprep.mubr.f32.mxu0 0.0
    %148 = vmatmul.mubr.f32.gmra.mrb[0].mxu0 %v74
    %v149 = vpop.f32.mrb[0].mxu0
    %v150 = vadd.f32 0.0, %v149
    %v151 = vpop.f32.mrb[0].mxu0
    %152 = vdwg.mxu0
    %vm153 = vcmask 31744
    %154 = vst.msk [vmem:[%s5] sm:$0xff] %vm153, %v145
    %155 = vst.msk [vmem:[%s5 + $0x8] sm:$0xff] %vm153, %v150
    %v156 = vld [vmem:[%s2] sm:$0xf]
    %157 = vmatprep.subr.mxu0 0.0
    %158 = vmatpush1.xpose.msra.mxu0 %v71
    %159 = vmatprep.subr.mxu0 0.0
    %160 = vmatpush1.xpose.msra.mxu0 %v74
    %161 = vmatprep.subr.mxu0 0.0
    %162 = vmatpush1.xpose.msra.mxu0 0.0
    %163 = vmatprep.subr.mxu0 0.0
    %164 = vmatpush1.xpose.msra.mxu0 0.0
    %165 = vmatprep.subr.mxu0 0.0
    %166 = vmatpush1.xpose.msra.mxu0 0.0
    %167 = vmatprep.subr.mxu0 0.0
    %168 = vmatpush1.xpose.msra.mxu0 0.0
    %169 = vmatprep.subr.mxu0 0.0
    %170 = vmatpush1.xpose.msra.mxu0 0.0
    %171 = vmatprep.subr.mxu0 0.0
    %172 = vmatpush1.xpose.msra.mxu0 0.0
    %173 = vmatprep.subr.mxu0 0.0
    %174 = vmatpush1.xpose.msra.mxu0 0.0
    %175 = vmatprep.subr.mxu0 0.0
    %176 = vmatpush1.xpose.msra.mxu0 0.0
    %177 = vmatprep.subr.mxu0 0.0
    %178 = vmatpush1.xpose.msra.mxu0 0.0
    %179 = vmatprep.subr.mxu0 0.0
    %180 = vmatpush1.xpose.msra.mxu0 0.0
    %181 = vmatprep.subr.mxu0 0.0
    %182 = vmatpush1.xpose.msra.mxu0 0.0
    %183 = vmatprep.subr.mxu0 0.0
    %184 = vmatpush1.xpose.msra.mxu0 0.0
    %185 = vmatprep.subr.mxu0 0.0
    %186 = vmatpush1.xpose.msra.mxu0 0.0
    %187 = vmatprep.subr.mxu0 0.0
    %188 = vmatpush1.xpose.msra.mxu0 0.0
    %189 = vmatprep.subr.mxu0 0.0
    %190 = vmatpush1.xpose.msra.mxu0 0.0
    %191 = vmatprep.subr.mxu0 0.0
    %192 = vmatpush1.xpose.msra.mxu0 0.0
    %193 = vmatprep.subr.mxu0 0.0
    %194 = vmatpush1.xpose.msra.mxu0 0.0
    %195 = vmatprep.subr.mxu0 0.0
    %196 = vmatpush1.xpose.msra.mxu0 0.0
    %197 = vmatprep.subr.mxu0 0.0
    %198 = vmatpush1.xpose.msra.mxu0 0.0
    %199 = vmatprep.subr.mxu0 0.0
    %200 = vmatpush1.xpose.msra.mxu0 0.0
    %201 = vmatprep.subr.mxu0 0.0
    %202 = vmatpush1.xpose.msra.mxu0 0.0
    %203 = vmatprep.subr.mxu0 0.0
    %204 = vmatpush1.xpose.msra.mxu0 0.0
    %205 = vmatprep.subr.mxu0 0.0
    %206 = vmatpush1.xpose.msra.mxu0 0.0
    %207 = vmatprep.subr.mxu0 0.0
    %208 = vmatpush1.xpose.msra.mxu0 0.0
    %209 = vmatprep.subr.mxu0 0.0
    %210 = vmatpush1.xpose.msra.mxu0 0.0
    %211 = vmatprep.subr.mxu0 0.0
    %212 = vmatpush1.xpose.msra.mxu0 0.0
    %213 = vmatprep.subr.mxu0 0.0
    %214 = vmatpush1.xpose.msra.mxu0 0.0
    %215 = vmatprep.subr.mxu0 0.0
    %216 = vmatpush1.xpose.msra.mxu0 0.0
    %217 = vmatprep.subr.mxu0 0.0
    %218 = vmatpush1.xpose.msra.mxu0 0.0
    %219 = vmatprep.subr.mxu0 0.0
    %220 = vmatpush1.xpose.msra.mxu0 0.0
    %221 = vmatprep.mubr.f32.mxu0 0.0
    %222 = vmatmul.mubr.f32.gmra.mrb[0].mxu0 %v156
    %v223 = vpop.f32.mrb[0].mxu0
    %v224 = vadd.f32 0.0, %v223
    %v225 = vpop.f32.mrb[0].mxu0
    %226 = vdwg.mxu0
    %vm227 = vcmask 125952
    %228 = vst.msk [vmem:[#allocation4] sm:$0xf] %vm227, %v224
    %v229 = vpack.c.bf16 %v74, %v71
    %v231 = vunpack.c.l.b16 %v229
    %v232 = vunpack.c.h.b16 %v229
    %v233 = vpack.c.b16 %v231, %v231
    %v234 = vpack.c.b16 %v232, %v232
    %237 = vst [vmem:[#allocation2] sm:$0xf] %v233
    %238 = vst [vmem:[#allocation2 + $0x4] sm:$0xf] %v234
    // Predicated region
    $region18: #{tpu_custom_call.1} parent=1 // pred_check
      _
    $region19: #{tpu_custom_call.1} parent=1 // pred_check_branch
      %240 = sbr.rel (0) target = $region21
    $region20: #{tpu_custom_call.1} parent=1 // pred_region
      %s242 = ssub.s32 128, 128
      %243 = vsyncadd [#allocation3], %s242
      %s244 = sshll.u32 [#allocation2], 4
      %s245 = int_to_ptr.vmem [resolvable:$true] %s244
      %250 = dma.vmem_to_hbm [thread:$0]  %s245, 128, %s4, [#allocation3], 64, 64, 4
    $region21: #{tpu_custom_call.1} parent=1 // pred_fallthru
      _
    // Predicated region
    $region22: #{tpu_custom_call.1} parent=1 // pred_check
      _
    $region23: #{tpu_custom_call.1} parent=1 // pred_check_branch
      %252 = sbr.rel (0) target = $region25
    $region24: #{tpu_custom_call.1} parent=1 // pred_region
      _
    $region25: #{tpu_custom_call.1} parent=1 // pred_fallthru
      _
    // Predicated region
    $region26: #{tpu_custom_call.1} parent=1 // pred_check
      _
    $region27: #{tpu_custom_call.1} parent=1 // pred_check_branch
      %254 = sbr.rel (0) target = $region29
    $region28: #{tpu_custom_call.1} parent=1 // pred_region
      %s256 = ssub.s32 64, 64
      %257 = vsyncadd [#allocation5], %s256
      %s259 = sshll.u32 [#allocation4], 4
      %s260 = int_to_ptr.vmem [resolvable:$true] %s259
      %262 = dma.vmem_to_hbm [thread:$0]  %s260, 64, %s6, [#allocation5]
    $region29: #{tpu_custom_call.1} parent=1 // pred_fallthru
      _
    // Predicated region
    $region30: #{tpu_custom_call.1} parent=1 // pred_check
      _
    $region31: #{tpu_custom_call.1} parent=1 // pred_check_branch
      %264 = sbr.rel (0) target = $region33
    $region32: #{tpu_custom_call.1} parent=1 // pred_region
      %265 = dma.done [#allocation3], 128
    $region33: #{tpu_custom_call.1} parent=1 // pred_fallthru
      _
    // Predicated region
    $region34: #{tpu_custom_call.1} parent=1 // pred_check
      _
    $region35: #{tpu_custom_call.1} parent=1 // pred_check_branch
      %267 = sbr.rel (0) target = $region37
    $region36: #{tpu_custom_call.1} parent=1 // pred_region
      _
    $region37: #{tpu_custom_call.1} parent=1 // pred_fallthru
      _
    // Predicated region
    $region38: #{tpu_custom_call.1} parent=1 // pred_check
      _
    $region39: #{tpu_custom_call.1} parent=1 // pred_check_branch
      %269 = sbr.rel (0) target = $region41
    $region40: #{tpu_custom_call.1} parent=1 // pred_region
      %270 = dma.done [#allocation5], 64
    $region41: #{tpu_custom_call.1} parent=1 // pred_fallthru
      _
    %271 = vsyncpa [#allocation3], 1
    %272 = vsyncpa [#allocation5], 1

</llo_original>
